<compile_context>
chip_gen: v7x
topology: tpu7x:2x2x1
jax: 0.10.0
libtpu: 0.0.40
codegen_flags: <defaults>
</compile_context>

<pallas_src>
import jax
import jax.numpy as jnp
from jax.experimental import pallas as pl
from jax.experimental.pallas import tpu as pltpu


# Rows per grid step. Double-buffered footprint:
#   x tile (2, TN) f32 = 2 MiB x2  +  out tile (1, TN) f32 = 1 MiB x2  ~= 6 MiB.
_TILE_N = 256 * 1024


def linreg_kernel(x_ref, w_ref, b_ref, o_ref):
    # x_ref: (2, TN) VMEM, feature-major
    # w_ref: (2,)  SMEM    b_ref: (1,) SMEM
    # o_ref: (1, TN) VMEM, lane-dense
    w0 = w_ref[0]
    w1 = w_ref[1]
    b = b_ref[0]
    # y = w0*x0 + w1*x1 + b : pure full-width VPU work, no XLU reduce, no MXU.
    o_ref[...] = w0 * x_ref[0:1, :] + w1 * x_ref[1:2, :] + b


def _round_up(v, m):
    return ((v + m - 1) // m) * m


def linear_regression(x, weight, bias, *, tile_n=_TILE_N):
    """x: (N, 2) f32; weight: (1, 2) f32; bias: (1,) f32 -> (N, 1) f32."""
    n, f = x.shape
    assert f == 2 and weight.shape == (1, 2) and bias.shape == (1,)

    # Lane-dense tile size (multiple of 128); pad N so the grid divides it.
    tn = min(tile_n, _round_up(max(n, 1), 128))
    n_pad = _round_up(n, tn)

    # Feature-major layout (2, N_pad). Ideally the caller would store x this
    # way already; the one-off transpose/pad here is plain XLA, outside the
    # kernel's hot path.
    x_fm = jnp.pad(x, ((0, n_pad - n), (0, 0))).T

    out_flat = pl.pallas_call(
        linreg_kernel,
        grid=(n_pad // tn,),
        out_shape=jax.ShapeDtypeStruct((1, n_pad), x.dtype),
        in_specs=[
            pl.BlockSpec((2, tn), lambda i: (0, i)),                  # x (2, N)
            pl.BlockSpec(memory_space=pltpu.MemorySpace.SMEM),        # weight
            pl.BlockSpec(memory_space=pltpu.MemorySpace.SMEM),        # bias
        ],
        out_specs=pl.BlockSpec((1, tn), lambda i: (0, i)),
        compiler_params=pltpu.CompilerParams(
            dimension_semantics=("parallel",)),
    )(x_fm, weight.reshape(2), bias)

    # (1, n_pad) -> (n_pad, 1) is the same contiguous buffer (free reshape);
    # slice off the padding rows.
    return out_flat.reshape(n_pad, 1)[:n]


if __name__ == "__main__":
    key = jax.random.PRNGKey(0)
    kx, kw, kb = jax.random.split(key, 3)

    # Small batch of 2-feature samples, as the forward implies.
    n, in_features, out_features = 8, 2, 1
    x = jax.random.normal(kx, (n, in_features), dtype=jnp.float32)

    # Deterministic parameter init mirroring nn.Linear's default
    # U(-1/sqrt(fan_in), 1/sqrt(fan_in)).
    bound = 1.0 / jnp.sqrt(jnp.float32(in_features))
    weight = jax.random.uniform(
        kw, (out_features, in_features), dtype=jnp.float32,
        minval=-bound, maxval=bound)
    bias = jax.random.uniform(
        kb, (out_features,), dtype=jnp.float32, minval=-bound, maxval=bound)

    out = jax.jit(linear_regression)(x, weight, bias)
    jax.block_until_ready(out)

    ref = x @ weight.T + bias
    assert out.shape == (n, out_features)
    assert jnp.allclose(out, ref, atol=1e-5, rtol=1e-5)

    # Exercise the multi-tile grid + padding path (batch not a tile multiple).
    n2 = 300
    x2 = jax.random.normal(jax.random.PRNGKey(1), (n2, in_features),
                           dtype=jnp.float32)
    out2 = jax.jit(
        lambda a, w, b: linear_regression(a, w, b, tile_n=128))(x2, weight, bias)
    jax.block_until_ready(out2)
    ref2 = x2 @ weight.T + bias
    assert out2.shape == (n2, out_features)
    assert jnp.allclose(out2, ref2, atol=1e-5, rtol=1e-5)

    print("KERNEL_OK")
</pallas_src>

<mosaic_0001>
module attributes {stable_mosaic.version = 11 : i64} {
  func.func @linreg_kernel(%arg0: i32, %arg1: memref<2x128xf32, #tpu.memory_space<vmem>>, %arg2: memref<2xf32, #tpu.memory_space<smem>>, %arg3: memref<1xf32, #tpu.memory_space<smem>>, %arg4: memref<1x128xf32, #tpu.memory_space<vmem>>) attributes {dimension_semantics = [#tpu.dimension_semantics<parallel>], iteration_bounds = array<i64: 1>, scalar_prefetch = 0 : i64, scratch_operands = 0 : i64, tpu.core_type = #tpu.core_type<tc>, window_params = [{transform_indices = @transform_0, window_bounds = array<i64: 2, 128>}, {transform_indices = @transform_1, window_bounds = array<i64: 2>}, {transform_indices = @transform_2, window_bounds = array<i64: 1>}, {transform_indices = @transform_3, window_bounds = array<i64: 1, 128>}]} {
    %c0 = arith.constant 0 : index
    %0 = memref.load %arg2[%c0] : memref<2xf32, #tpu.memory_space<smem>>
    %c1 = arith.constant 1 : index
    %1 = memref.load %arg2[%c1] : memref<2xf32, #tpu.memory_space<smem>>
    %c0_0 = arith.constant 0 : index
    %2 = memref.load %arg3[%c0_0] : memref<1xf32, #tpu.memory_space<smem>>
    %c0_1 = arith.constant 0 : index
    %c0_2 = arith.constant 0 : index
    %3 = vector.load %arg1[%c0_1, %c0_2] : memref<2x128xf32, #tpu.memory_space<vmem>>, vector<1x128xf32>
    %4 = vector.broadcast %0 : f32 to vector<1x128xf32>
    %5 = arith.mulf %4, %3 : vector<1x128xf32>
    %c1_3 = arith.constant 1 : index
    %c0_4 = arith.constant 0 : index
    %6 = vector.load %arg1[%c1_3, %c0_4] : memref<2x128xf32, #tpu.memory_space<vmem>>, vector<1x128xf32>
    %7 = vector.broadcast %1 : f32 to vector<1x128xf32>
    %8 = arith.mulf %7, %6 : vector<1x128xf32>
    %9 = arith.addf %5, %8 : vector<1x128xf32>
    %10 = vector.broadcast %2 : f32 to vector<1x128xf32>
    %11 = arith.addf %9, %10 : vector<1x128xf32>
    %c0_5 = arith.constant 0 : index
    %c0_6 = arith.constant 0 : index
    %12 = vector.load %arg4[%c0_5, %c0_6] : memref<1x128xf32, #tpu.memory_space<vmem>>, vector<1x128xf32>
    tpu.vector_store %arg4[%c0_5, %c0_6], %11 {strides = array<i32>} : memref<1x128xf32, #tpu.memory_space<vmem>>, vector<1x128xf32>,
    return
  }
  func.func @transform_0(%arg0: i32) -> (i32, i32) {
    %c0_i32 = arith.constant 0 : i32
    %c0_i32_0 = arith.constant 0 : i32
    return %c0_i32, %arg0 : i32, i32
  }
  func.func @transform_1(%arg0: i32) -> i32 {
    %c0_i32 = arith.constant 0 : i32
    %c0_i32_0 = arith.constant 0 : i32
    return %c0_i32 : i32
  }
  func.func @transform_2(%arg0: i32) -> i32 {
    %c0_i32 = arith.constant 0 : i32
    %c0_i32_0 = arith.constant 0 : i32
    return %c0_i32 : i32
  }
  func.func @transform_3(%arg0: i32) -> (i32, i32) {
    %c0_i32 = arith.constant 0 : i32
    %c0_i32_0 = arith.constant 0 : i32
    return %c0_i32, %arg0 : i32, i32
  }
}

</mosaic_0001>

<llo_original>
// kernel: linear_regression.1
$region0: #{linear_regression.1}
  #allocation0 [shape = 'u32[]', space=smem, size = 0x4, offset = 0x4, fixed_abs, tag = 'smem constant byte address 0x4 - core index']
  #allocation1 [shape = 'u32[144,128]{1,0:T(1,128)}', space=vmem, size = 0x12000, scoped, tag = 'internal scratch']
  #allocation2 [shape = 'f32[1]{0:T(128)S(6)}', space=smem, size = 0x200, scoped, tag = 'scoped memory for linear_regression.1']
  %s0 = inlined_call_operand.vmem [shape: f32[2,128], index: 0, kind: input, shape index: {}]
  %s1 = inlined_call_operand.vmem [shape: f32[2], index: 1, kind: input, shape index: {}]
  %s2 = inlined_call_operand.<no memory space> [shape: f32[1], index: 2, kind: input, shape index: {}]
  %s3 = inlined_call_operand.vmem [shape: f32[1,128], index: 3, kind: output, shape index: {}]
  %s4 = sld [smem:[#allocation0]]
  $region26: #{linear_regression.1} parent=0
    _
  %s6 = ssub.s32 1, %s4
  %s7 = scalar_select 0, %s6, %s4
  %8 = sst [smem:[#allocation2]] %s2
  $region1: #{linear_regression.1} parent=0
    #allocation3 [shape = 'u8[512]{0}', space=smem, size = 0x200, scoped, tag = 'input window, operand 1, single buffered']
    #allocation4 [shape = 's32[1]{0}', space=sflag, size = 0x4, scoped, tag = 'scoped memory for linear_regression.1']
    %9 = vsyncpa [#allocation4], 0
    // Predicated region
    $region2: #{linear_regression.1} parent=1 // pred_check
      _
    $region3: #{linear_regression.1} parent=1 // pred_check_branch
      %11 = sbr.rel (0) target = $region5
    $region4: #{linear_regression.1} parent=1 // pred_region
      _
    $region5: #{linear_regression.1} parent=1 // pred_fallthru
      _
    // Predicated region
    $region6: #{linear_regression.1} parent=1 // pred_check
      _
    $region7: #{linear_regression.1} parent=1 // pred_check_branch
      %13 = sbr.rel (0) target = $region9
    $region8: #{linear_regression.1} parent=1 // pred_region
      %s15 = ssub.s32 16, 16
      %16 = vsyncadd [#allocation4], %s15
      %s18 = sshll.u32 %s1, 4
      %s19 = int_to_ptr.vmem [resolvable:$true] %s18
      %21 = dma.vmem_to_smem %s19, 16, [#allocation3], [#allocation4]
    $region9: #{linear_regression.1} parent=1 // pred_fallthru
      _
    // Predicated region
    $region10: #{linear_regression.1} parent=1 // pred_check
      _
    $region11: #{linear_regression.1} parent=1 // pred_check_branch
      %23 = sbr.rel (0) target = $region13
    $region12: #{linear_regression.1} parent=1 // pred_region
      _
    $region13: #{linear_regression.1} parent=1 // pred_fallthru
      _
    // Predicated region
    $region14: #{linear_regression.1} parent=1 // pred_check
      _
    $region15: #{linear_regression.1} parent=1 // pred_check_branch
      %25 = sbr.rel (0) target = $region17
    $region16: #{linear_regression.1} parent=1 // pred_region
      %26 = dma.done [#allocation4], 16
    $region17: #{linear_regression.1} parent=1 // pred_fallthru
      _
    %27 = sfence
    %s28 = sld [smem:[#allocation3]]
    %s29 = sld [smem:[#allocation3 + $0x1]]
    %s30 = sld [smem:[#allocation2]]
    %v31 = vld [vmem:[%s0] sm:$0x1]
    %v32 = vstv %s28
    %v33 = vmul.f32 %v32, %v31
    %v34 = vld [vmem:[%s0 + $0x1] sm:$0x1]
    %v35 = vstv %s29
    %v36 = vmul.f32 %v35, %v34
    %v37 = vadd.f32 %v33, %v36
    %v38 = vstv %s30
    %v39 = vadd.f32 %v37, %v38
    %40 = vst [vmem:[%s3] sm:$0x1] %v39
    // Predicated region
    $region18: #{linear_regression.1} parent=1 // pred_check
      _
    $region19: #{linear_regression.1} parent=1 // pred_check_branch
      %42 = sbr.rel (0) target = $region21
    $region20: #{linear_regression.1} parent=1 // pred_region
      _
    $region21: #{linear_regression.1} parent=1 // pred_fallthru
      _
    // Predicated region
    $region22: #{linear_regression.1} parent=1 // pred_check
      _
    $region23: #{linear_regression.1} parent=1 // pred_check_branch
      %44 = sbr.rel (0) target = $region25
    $region24: #{linear_regression.1} parent=1 // pred_region
      _
    $region25: #{linear_regression.1} parent=1 // pred_fallthru
      _
    %45 = vsyncpa [#allocation4], 1

</llo_original>
